<compile_context>
chip_gen: v5e
topology: v5e:2x2
jax: 0.10.0
libtpu: 0.0.40
codegen_flags: <defaults>
</compile_context>

<pallas_src>
import functools

import jax
import jax.numpy as jnp
import numpy as np
from jax.experimental import pallas as pl
from jax.experimental.pallas import tpu as pltpu


def _subgrid_accum_kernel(x_ref, o_ref, pad_ref, *, h, w):
    """Depthwise 4x4 all-ones conv (stride 1, pad 2) on one channel block.

    x_ref  : (cb, h, w)        unpadded input planes
    o_ref  : (cb, h+1, w+1)    box-summed output
    pad_ref: (cb, h+4, w+4)    float32 VMEM staging canvas (conv's zero pad)
    """
    cb = x_ref.shape[0]
    ho, wo = h + 1, w + 1
    hp, wp = h + 4, w + 4

    # Realize the conv's zero padding (pad=2 per side) in VMEM: zero only the
    # 2-wide border each step (scratch persistence across grid steps cannot be
    # assumed under megacore sharding), then drop the tile into the interior.
    zero_rows = jnp.zeros((cb, 2, wp), jnp.float32)
    zero_cols = jnp.zeros((cb, h, 2), jnp.float32)
    pad_ref[:, 0:2, :] = zero_rows                      # top border
    pad_ref[:, h + 2:hp, :] = zero_rows                 # bottom border
    pad_ref[:, 2:h + 2, 0:2] = zero_cols                # left border
    pad_ref[:, 2:h + 2, w + 2:wp] = zero_cols           # right border
    pad_ref[:, 2:h + 2, 2:w + 2] = x_ref[...].astype(jnp.float32)

    # Separable 4x4 all-ones box sum, all on in-register values (no row-sum
    # scratch round trip): 4-row sum, then 4-column sum — 6 adds per output.
    xp = pad_ref[...]                                   # (cb, hp, wp) f32
    rs = (xp[:, 0:ho, :] + xp[:, 1:ho + 1, :]
          + xp[:, 2:ho + 2, :] + xp[:, 3:ho + 3, :])    # (cb, ho, wp)
    out = (rs[:, :, 0:wo] + rs[:, :, 1:wo + 1]
           + rs[:, :, 2:wo + 2] + rs[:, :, 3:wo + 3])   # (cb, ho, wo)
    o_ref[...] = out.astype(o_ref.dtype)


def _vmem_budget_and_limit():
    """Per-generation VMEM block budget and explicit scoped-VMEM limit."""
    try:
        cap = int(pltpu.get_tpu_info().vmem_capacity_bytes)
    except Exception:
        cap = None
    if not cap or cap <= 0:
        cap = 64 << 20                    # conservative (v7x-sized) fallback
    budget = (cap * 3) // 8               # ~24 MiB on v7x, ~48 MiB on v5e/v6e
    limit = min((cap * 3) // 4, 100 << 20)
    return budget, limit


def _pick_channel_block(nc, h, w, itemsize, budget_bytes):
    """Largest divisor of N*C fitting the VMEM budget, with >= 4 grid steps."""
    hp, wp, ho, wo = h + 4, w + 4, h + 1, w + 1
    per_chan = (2 * h * w * itemsize          # double-buffered input block
                + 2 * ho * wo * itemsize      # double-buffered output block
                + 2 * hp * wp * 4             # f32 staging canvas + loaded value
                + 2 * ho * wp * 4             # row-sum value + shifted temps
                + ho * wo * 4)                # column-sum result value
    cb = int(max(1, min(nc, budget_bytes // per_chan)))
    # Keep >= 4 grid steps (>= 2 when N*C is tiny) so both v7x TensorCores get
    # work and the input/output DMAs double-buffer against compute.
    if nc >= 4:
        cb = min(cb, nc // 4)
    elif nc >= 2:
        cb = min(cb, nc // 2)
    cb = max(cb, 1)
    while nc % cb:
        cb -= 1
    return cb


def subgrid_accumulation_forward(x, *, channel_block=None):
    """Equivalent of SubGridAccumulationLayer.forward.

    Args:
      x: (N, C, H, W) array (NCHW; C=8 in the SIFTNet use case).
    Returns:
      (N, C, H+1, W+1) — depthwise 4x4 all-ones conv, stride 1, pad 2.
    """
    n, c, h, w = x.shape
    nc = n * c
    ho, wo = h + 1, w + 1
    hp, wp = h + 4, w + 4

    budget, vmem_limit = _vmem_budget_and_limit()
    cb = (channel_block if channel_block is not None
          else _pick_channel_block(nc, h, w, x.dtype.itemsize, budget))
    assert nc % cb == 0, "channel_block must divide N*C"

    # TODO(synk): add a second grid axis over output row-bands (3-row input
    # halo) for huge H*W planes where a single channel plane exceeds budget.

    out = pl.pallas_call(
        functools.partial(_subgrid_accum_kernel, h=h, w=w),
        out_shape=jax.ShapeDtypeStruct((nc, ho, wo), x.dtype),
        grid=(nc // cb,),
        in_specs=[pl.BlockSpec((cb, h, w), lambda i: (i, 0, 0))],
        out_specs=pl.BlockSpec((cb, ho, wo), lambda i: (i, 0, 0)),
        scratch_shapes=[pltpu.VMEM((cb, hp, wp), jnp.float32)],
        compiler_params=pltpu.CompilerParams(
            dimension_semantics=("parallel",),
            vmem_limit_bytes=vmem_limit),
    )(x.reshape(nc, h, w))      # leading-dim reshape only: no data movement

    return out.reshape(n, c, ho, wo)


def _reference(x):
    """Pure-JAX reference: depthwise 4x4 all-ones conv, stride 1, pad 2."""
    n, c, h, w = x.shape
    xpad = jnp.pad(x.astype(jnp.float32), ((0, 0), (0, 0), (2, 2), (2, 2)))
    ref = jnp.zeros((n, c, h + 1, w + 1), jnp.float32)
    for ki in range(4):
        for kj in range(4):
            ref = ref + xpad[:, :, ki:ki + h + 1, kj:kj + w + 1]
    return ref.astype(x.dtype)


if __name__ == "__main__":
    key = jax.random.PRNGKey(0)
    # Module operates on (b, 8, m, n); small deterministic example.
    x = jax.random.normal(key, (2, 8, 16, 16), dtype=jnp.float32)

    ref = np.asarray(_reference(x))

    # Auto-picked channel block (>= 4 grid steps for pipelining / 2-TC v7x).
    out = jax.block_until_ready(subgrid_accumulation_forward(x))
    assert out.shape == (2, 8, 17, 17)
    np.testing.assert_allclose(np.asarray(out), ref, rtol=1e-5, atol=1e-5)

    # Also exercise a different channel block (8-step grid).
    out2 = jax.block_until_ready(
        subgrid_accumulation_forward(x, channel_block=2))
    np.testing.assert_allclose(np.asarray(out2), ref, rtol=1e-5, atol=1e-5)

    print("KERNEL_OK")
</pallas_src>

<mosaic_0001>
module attributes {stable_mosaic.version = 11 : i64} {
  func.func @_subgrid_accum_kernel(%arg0: i32, %arg1: memref<4x16x16xf32, #tpu.memory_space<vmem>>, %arg2: memref<4x17x17xf32, #tpu.memory_space<vmem>>, %arg3: memref<4x20x20xf32, #tpu.memory_space<vmem>>) attributes {dimension_semantics = [#tpu.dimension_semantics<parallel>], iteration_bounds = array<i64: 4>, scalar_prefetch = 0 : i64, scratch_operands = 1 : i64, tpu.core_type = #tpu.core_type<tc>, window_params = [{transform_indices = @transform_0, window_bounds = array<i64: 4, 16, 16>}, {transform_indices = @transform_1, window_bounds = array<i64: 4, 17, 17>}]} {
    %cst = arith.constant 0.000000e+00 : f32
    %0 = vector.broadcast %cst : f32 to vector<4x2x20xf32>
    %cst_0 = arith.constant 0.000000e+00 : f32
    %1 = vector.broadcast %cst_0 : f32 to vector<4x16x2xf32>
    %c0 = arith.constant 0 : index
    %c0_1 = arith.constant 0 : index
    %c0_2 = arith.constant 0 : index
    %2 = vector.load %arg3[%c0, %c0_1, %c0_2] : memref<4x20x20xf32, #tpu.memory_space<vmem>>, vector<4x2x20xf32>
    tpu.vector_store %arg3[%c0, %c0_1, %c0_2], %0 {strides = array<i32>} : memref<4x20x20xf32, #tpu.memory_space<vmem>>, vector<4x2x20xf32>,
    %c0_3 = arith.constant 0 : index
    %c18 = arith.constant 18 : index
    %c0_4 = arith.constant 0 : index
    %3 = vector.load %arg3[%c0_3, %c18, %c0_4] : memref<4x20x20xf32, #tpu.memory_space<vmem>>, vector<4x2x20xf32>
    tpu.vector_store %arg3[%c0_3, %c18, %c0_4], %0 {strides = array<i32>} : memref<4x20x20xf32, #tpu.memory_space<vmem>>, vector<4x2x20xf32>,
    %c0_5 = arith.constant 0 : index
    %c2 = arith.constant 2 : index
    %c0_6 = arith.constant 0 : index
    %4 = vector.load %arg3[%c0_5, %c2, %c0_6] : memref<4x20x20xf32, #tpu.memory_space<vmem>>, vector<4x16x2xf32>
    tpu.vector_store %arg3[%c0_5, %c2, %c0_6], %1 {strides = array<i32>} : memref<4x20x20xf32, #tpu.memory_space<vmem>>, vector<4x16x2xf32>,
    %c0_7 = arith.constant 0 : index
    %c2_8 = arith.constant 2 : index
    %c18_9 = arith.constant 18 : index
    %5 = vector.load %arg3[%c0_7, %c2_8, %c18_9] : memref<4x20x20xf32, #tpu.memory_space<vmem>>, vector<4x16x2xf32>
    tpu.vector_store %arg3[%c0_7, %c2_8, %c18_9], %1 {strides = array<i32>} : memref<4x20x20xf32, #tpu.memory_space<vmem>>, vector<4x16x2xf32>,
    %c0_10 = arith.constant 0 : index
    %c0_11 = arith.constant 0 : index
    %c0_12 = arith.constant 0 : index
    %6 = vector.load %arg1[%c0_10, %c0_11, %c0_12] : memref<4x16x16xf32, #tpu.memory_space<vmem>>, vector<4x16x16xf32>
    %c0_13 = arith.constant 0 : index
    %c2_14 = arith.constant 2 : index
    %c2_15 = arith.constant 2 : index
    %7 = vector.load %arg3[%c0_13, %c2_14, %c2_15] : memref<4x20x20xf32, #tpu.memory_space<vmem>>, vector<4x16x16xf32>
    tpu.vector_store %arg3[%c0_13, %c2_14, %c2_15], %6 {strides = array<i32>} : memref<4x20x20xf32, #tpu.memory_space<vmem>>, vector<4x16x16xf32>,
    %c0_16 = arith.constant 0 : index
    %c0_17 = arith.constant 0 : index
    %c0_18 = arith.constant 0 : index
    %8 = vector.load %arg3[%c0_16, %c0_17, %c0_18] : memref<4x20x20xf32, #tpu.memory_space<vmem>>, vector<4x20x20xf32>
    %9 = vector.extract_strided_slice %8 {offsets = [0, 0, 0], sizes = [4, 17, 20], strides = [1, 1, 1]} : vector<4x20x20xf32> to vector<4x17x20xf32>
    %10 = vector.extract_strided_slice %8 {offsets = [0, 1, 0], sizes = [4, 17, 20], strides = [1, 1, 1]} : vector<4x20x20xf32> to vector<4x17x20xf32>
    %11 = arith.addf %9, %10 : vector<4x17x20xf32>
    %12 = vector.extract_strided_slice %8 {offsets = [0, 2, 0], sizes = [4, 17, 20], strides = [1, 1, 1]} : vector<4x20x20xf32> to vector<4x17x20xf32>
    %13 = arith.addf %11, %12 : vector<4x17x20xf32>
    %14 = vector.extract_strided_slice %8 {offsets = [0, 3, 0], sizes = [4, 17, 20], strides = [1, 1, 1]} : vector<4x20x20xf32> to vector<4x17x20xf32>
    %15 = arith.addf %13, %14 : vector<4x17x20xf32>
    %16 = vector.extract_strided_slice %15 {offsets = [0, 0, 0], sizes = [4, 17, 17], strides = [1, 1, 1]} : vector<4x17x20xf32> to vector<4x17x17xf32>
    %17 = vector.extract_strided_slice %15 {offsets = [0, 0, 1], sizes = [4, 17, 17], strides = [1, 1, 1]} : vector<4x17x20xf32> to vector<4x17x17xf32>
    %18 = arith.addf %16, %17 : vector<4x17x17xf32>
    %19 = vector.extract_strided_slice %15 {offsets = [0, 0, 2], sizes = [4, 17, 17], strides = [1, 1, 1]} : vector<4x17x20xf32> to vector<4x17x17xf32>
    %20 = arith.addf %18, %19 : vector<4x17x17xf32>
    %21 = vector.extract_strided_slice %15 {offsets = [0, 0, 3], sizes = [4, 17, 17], strides = [1, 1, 1]} : vector<4x17x20xf32> to vector<4x17x17xf32>
    %22 = arith.addf %20, %21 : vector<4x17x17xf32>
    %c0_19 = arith.constant 0 : index
    %c0_20 = arith.constant 0 : index
    %c0_21 = arith.constant 0 : index
    %23 = vector.load %arg2[%c0_19, %c0_20, %c0_21] : memref<4x17x17xf32, #tpu.memory_space<vmem>>, vector<4x17x17xf32>
    tpu.vector_store %arg2[%c0_19, %c0_20, %c0_21], %22 {strides = array<i32>} : memref<4x17x17xf32, #tpu.memory_space<vmem>>, vector<4x17x17xf32>,
    return
  }
  func.func @transform_0(%arg0: i32) -> (i32, i32, i32) {
    %c0_i32 = arith.constant 0 : i32
    %c0_i32_0 = arith.constant 0 : i32
    %c0_i32_1 = arith.constant 0 : i32
    return %arg0, %c0_i32, %c0_i32_0 : i32, i32, i32
  }
  func.func @transform_1(%arg0: i32) -> (i32, i32, i32) {
    %c0_i32 = arith.constant 0 : i32
    %c0_i32_0 = arith.constant 0 : i32
    %c0_i32_1 = arith.constant 0 : i32
    return %arg0, %c0_i32, %c0_i32_0 : i32, i32, i32
  }
}

</mosaic_0001>

<llo_original>
// kernel: tpu_custom_call.1
$region0: #{tpu_custom_call.1}
  #allocation0 [shape = 'u32[]', space=smem, size = 0x4, offset = 0x4, fixed_abs, tag = 'smem constant byte address 0x4 - core index']
  #allocation1 [shape = 'u32[72,128]{1,0:T(1,128)}', space=vmem, size = 0x9000, scoped, tag = 'internal scratch']
  #allocation2 [shape = 'f32[4,20,20]{2,1,0:T(8,128)}', space=vmem, size = 0xc000, scoped, tag = 'scratch operand']
  %s0 = inlined_call_operand.hbm [shape: f32[16,16,16], index: 0, kind: input, shape index: {}]
  %s1 = inlined_call_operand.vmem [shape: f32[16,17,17], index: 1, kind: output, shape index: {}]
  %s2 = sld [smem:[#allocation0]]
  $region41: #{tpu_custom_call.1} parent=0
    _
  %s4 = ssub.s32 1, %s2
  %s5 = scalar_select 0, %s4, %s2
  $region1: #{tpu_custom_call.1} parent=0
    #allocation3 [shape = 'u8[65536]{0}', space=vmem, size = 0x10000, scoped, tag = 'input window, operand 0']
    #allocation4 [shape = 's32[2]{0}', space=sflag, size = 0x8, scoped, tag = 'scoped memory for tpu_custom_call.1']
    %6 = vsyncpa [#allocation4], 0
    %s7 = scalar_lea.sflag [#allocation4], 1
    %8 = vsyncpa %s7, 0
    loop: start=0, step=1, limit=6
    $region2: #{tpu_custom_call.1} parent=1 // loop_pre_header
      _
    $region3: #{tpu_custom_call.1} parent=1 // loop_header
      %s10 = sphi 0, %s14
      %p11 = scmp.ge.s32.totalorder %s10, 6
      %s20 = sphi 0, %s22
      %s23 = sphi 0, %s20
      %s24 = sphi 0, %s23
      %s40 = sphi 0, %s24
      %s46 = sphi 0, %s48
      %s49 = sphi 0, %s46
      %s50 = sphi 0, %s49
      %s66 = sphi 0, %s50
    $region4: #{tpu_custom_call.1} parent=1 // loop_header_branch
      %13 = sbr.rel (%p11) target = $region8
    $region5: #{tpu_custom_call.1} parent=1 // loop_body
      %s15 = ssub.s32 %s10, 1
      %s16 = ssub.s32 %s10, 2
      %s17 = sadd.s32 %s10, 1
      %s18 = ssub.s32 %s10, %s17
      %p19 = scmp.eq.s32.totalorder %s18, 0
      %s21 = sadd.s32 %s20, 1
      %s22 = scalar_select %p19, %s20, %s21
      %p25 = pneg %p19
      %p26 = scmp.eq.s32.totalorder %s10, 3
      %p27 = por %p25, %p26
      %p28 = scmp.ne.s32.totalorder %s20, %s23
      %p29 = scmp.eq.s32.totalorder %s10, 0
      %p30 = por %p28, %p29
      %p31 = scmp.ne.s32.totalorder %s20, %s23
      %p32 = scmp.eq.s32.totalorder %s15, 3
      %p33 = por %p31, %p32
      %p34 = scmp.ne.s32.totalorder %s23, %s24
      %p35 = scmp.eq.s32.totalorder %s15, 0
      %p36 = por %p34, %p35
      %p37 = scmp.ne.s32.totalorder %s23, %s24
      %p38 = scmp.eq.s32.totalorder %s16, 3
      %p39 = por %p37, %p38
      %p41 = scmp.ne.s32.totalorder %s24, %s40
      %p42 = scmp.eq.s32.totalorder %s16, 0
      %p43 = por %p41, %p42
      %s44 = ssub.s32 %s10, %s17
      %p45 = scmp.eq.s32.totalorder %s44, 0
      %s47 = sadd.s32 %s46, 1
      %s48 = scalar_select %p45, %s46, %s47
      %p51 = pneg %p45
      %p52 = scmp.eq.s32.totalorder %s10, 3
      %p53 = por %p51, %p52
      %p54 = scmp.ne.s32.totalorder %s46, %s49
      %p55 = scmp.eq.s32.totalorder %s10, 0
      %p56 = por %p54, %p55
      %p57 = scmp.ne.s32.totalorder %s46, %s49
      %p58 = scmp.eq.s32.totalorder %s15, 3
      %p59 = por %p57, %p58
      %p60 = scmp.ne.s32.totalorder %s49, %s50
      %p61 = scmp.eq.s32.totalorder %s15, 0
      %p62 = por %p60, %p61
      %p63 = scmp.ne.s32.totalorder %s49, %s50
      %p64 = scmp.eq.s32.totalorder %s16, 3
      %p65 = por %p63, %p64
      %p67 = scmp.ne.s32.totalorder %s50, %s66
      %p68 = scmp.eq.s32.totalorder %s16, 0
      %p69 = por %p67, %p68
      %p70 = scmp.le.s32.totalorder 1, %s10
      %p71 = scmp.lt.s32.totalorder %s10, 5
      %p72 = pnand %p70, %p71
      %p73 = pneg %p72
      // Predicated region
      $region9: #{tpu_custom_call.1} parent=5 // pred_check
        _
      $region10: #{tpu_custom_call.1} parent=5 // pred_check_branch
        %75 = sbr.rel (%p72) target = $region12
      $region11: #{tpu_custom_call.1} parent=5 // pred_region
        %s76 = ssub.s32 %s10, 1
      $region12: #{tpu_custom_call.1} parent=5 // pred_fallthru
        _
      %p77 = scmp.lt.s32.totalorder %s10, 4
      // Predicated region
      $region13: #{tpu_custom_call.1} parent=5 // pred_check
        %p78 = pneg %p77
      $region14: #{tpu_custom_call.1} parent=5 // pred_check_branch
        %80 = sbr.rel (%p78) target = $region16
      $region15: #{tpu_custom_call.1} parent=5 // pred_region
        // Predicated region
        $region17: #{tpu_custom_call.1} parent=15 // pred_check
          %p81 = pneg %p30
        $region18: #{tpu_custom_call.1} parent=15 // pred_check_branch
          %83 = sbr.rel (%p81) target = $region20
        $region19: #{tpu_custom_call.1} parent=15 // pred_region
          %s84 = sand.u32 %s20, 1
          %s85 = scalar_lea.sflag [#allocation4], %s84
          %s86 = sand.u32 %s20, 1
          %s87 = smul.addr %s86, 64
          %s88 = scalar_lea.vmem [#allocation3], %s87
          %s89 = smul.u32 4, %s10
          %91 = vsyncadd %s85, 0
          %s92 = smul.addr %s89, 2
          %s93 = smul.addr %s92, 8
          %s94 = scalar_lea.hbm %s0, %s93
          %s95 = sshll.u32 %s94, 4
          %s96 = int_to_ptr.hbm [resolvable:$true] %s95
          %s97 = sshll.u32 %s88, 4
          %s98 = int_to_ptr.vmem [resolvable:$true] %s97
          %103 = dma.hbm_to_vmem [thread:$0]  %s96, 1024, %s98, %s85, 128, 128, 8
        $region20: #{tpu_custom_call.1} parent=15 // pred_fallthru
          _
      $region16: #{tpu_custom_call.1} parent=5 // pred_fallthru
        _
      %p104 = scmp.le.s32.totalorder 1, %s10
      %p105 = scmp.lt.s32.totalorder %s10, 5
      %p106 = pnand %p104, %p105
      %p107 = pneg %p106
      // Predicated region
      $region21: #{tpu_custom_call.1} parent=5 // pred_check
        _
      $region22: #{tpu_custom_call.1} parent=5 // pred_check_branch
        %109 = sbr.rel (%p106) target = $region24
      $region23: #{tpu_custom_call.1} parent=5 // pred_region
        %s110 = ssub.s32 %s10, 1
        %s111 = sand.u32 %s23, 1
        %s112 = scalar_lea.sflag [#allocation4], %s111
        %s113 = sand.u32 %s23, 1
        %s114 = smul.addr %s113, 64
        %s115 = scalar_lea.vmem [#allocation3], %s114
        // Predicated region
        $region25: #{tpu_custom_call.1} parent=23 // pred_check
          %p116 = pneg %p36
        $region26: #{tpu_custom_call.1} parent=23 // pred_check_branch
          %118 = sbr.rel (%p116) target = $region28
        $region27: #{tpu_custom_call.1} parent=23 // pred_region
          %120 = dma.done %s112, 1024
        $region28: #{tpu_custom_call.1} parent=23 // pred_fallthru
          _
        %s121 = sand.u32 %s23, 1
        %s122 = scalar_lea.sflag [#allocation4], %s121
        %s123 = sand.u32 %s23, 1
        %s124 = smul.addr %s123, 64
        %s125 = scalar_lea.vmem [#allocation3], %s124
        %p126 = pneg %p36
        %p127 = pneg %p33
        %p128 = pneg %p62
        %p129 = pneg %p59
        %s130 = smul.u32 4, %s15
        %p131 = scmp.lt.s32.totalorder %s130, 15
        %s132 = scalar_select %p131, %s130, 15
        %s133 = smul.addr %s132, 3
        %s134 = smul.addr %s133, 8
        %s135 = scalar_lea.vmem %s1, %s134
        %s136 = smul.u32 4, %s15
        %s137 = smul.u32 4, %s15
        %p138 = scmp.lt.s32.totalorder %s137, 15
        %s139 = scalar_select %p138, %s137, 15
        %s140 = smul.addr %s139, 3
        %s141 = smul.addr %s140, 8
        %s142 = scalar_lea.vmem %s1, %s141
        %s143 = smul.u32 4, %s15
        %vm144 = vcmask 156672
        %145 = vst.msk [vmem:[#allocation2] sm:$0x3] %vm144, 0.0
        %146 = vst.msk [vmem:[#allocation2 + $0x18] sm:$0x3] %vm144, 0.0
        %147 = vst.msk [vmem:[#allocation2 + $0x30] sm:$0x3] %vm144, 0.0
        %148 = vst.msk [vmem:[#allocation2 + $0x48] sm:$0x3] %vm144, 0.0
        %149 = vst.msk [vmem:[#allocation2 + $0x12] sm:$0x3] %vm144, 0.0
        %150 = vst.msk [vmem:[#allocation2 + $0x2a] sm:$0x3] %vm144, 0.0
        %151 = vst.msk [vmem:[#allocation2 + $0x42] sm:$0x3] %vm144, 0.0
        %152 = vst.msk [vmem:[#allocation2 + $0x5a] sm:$0x3] %vm144, 0.0
        %vm153 = vcmask 15360
        %154 = vst.msk [vmem:[#allocation2 + $0x2] sm:$0xff] %vm153, 0.0
        %155 = vst.msk [vmem:[#allocation2 + $0xa] sm:$0xff] %vm153, 0.0
        %156 = vst.msk [vmem:[#allocation2 + $0x1a] sm:$0xff] %vm153, 0.0
        %157 = vst.msk [vmem:[#allocation2 + $0x22] sm:$0xff] %vm153, 0.0
        %158 = vst.msk [vmem:[#allocation2 + $0x32] sm:$0xff] %vm153, 0.0
        %159 = vst.msk [vmem:[#allocation2 + $0x3a] sm:$0xff] %vm153, 0.0
        %160 = vst.msk [vmem:[#allocation2 + $0x4a] sm:$0xff] %vm153, 0.0
        %161 = vst.msk [vmem:[#allocation2 + $0x52] sm:$0xff] %vm153, 0.0
        %vm162 = vcmask 162960
        %163 = vst.msk [vmem:[#allocation2 + $0x2] sm:$0xff] %vm162, 0.0
        %164 = vst.msk [vmem:[#allocation2 + $0xa] sm:$0xff] %vm162, 0.0
        %165 = vst.msk [vmem:[#allocation2 + $0x1a] sm:$0xff] %vm162, 0.0
        %166 = vst.msk [vmem:[#allocation2 + $0x22] sm:$0xff] %vm162, 0.0
        %167 = vst.msk [vmem:[#allocation2 + $0x32] sm:$0xff] %vm162, 0.0
        %168 = vst.msk [vmem:[#allocation2 + $0x3a] sm:$0xff] %vm162, 0.0
        %169 = vst.msk [vmem:[#allocation2 + $0x4a] sm:$0xff] %vm162, 0.0
        %170 = vst.msk [vmem:[#allocation2 + $0x52] sm:$0xff] %vm162, 0.0
        %v171 = vld [vmem:[%s115] sm:$0xff]
        %v172 = vld [vmem:[%s115 + $0x8] sm:$0xff]
        %v173 = vld [vmem:[%s115 + $0x10] sm:$0xff]
        %v174 = vld [vmem:[%s115 + $0x18] sm:$0xff]
        %v175 = vld [vmem:[%s115 + $0x20] sm:$0xff]
        %v176 = vld [vmem:[%s115 + $0x28] sm:$0xff]
        %v177 = vld [vmem:[%s115 + $0x30] sm:$0xff]
        %v178 = vld [vmem:[%s115 + $0x38] sm:$0xff]
        %187 = vrot.lane.b32.xlu0 %v171, 2
        %v188 = vpop.permute.xlu0 %187
        %189 = vrot.lane.b32.xlu0 %v172, 2
        %v190 = vpop.permute.xlu0 %189
        %191 = vrot.lane.b32.xlu0 %v173, 2
        %v192 = vpop.permute.xlu0 %191
        %193 = vrot.lane.b32.xlu0 %v174, 2
        %v194 = vpop.permute.xlu0 %193
        %195 = vrot.lane.b32.xlu0 %v175, 2
        %v196 = vpop.permute.xlu0 %195
        %197 = vrot.lane.b32.xlu0 %v176, 2
        %v198 = vpop.permute.xlu0 %197
        %199 = vrot.lane.b32.xlu0 %v177, 2
        %v200 = vpop.permute.xlu0 %199
        %201 = vrot.lane.b32.xlu0 %v178, 2
        %v202 = vpop.permute.xlu0 %201
        %vm211 = vcmask 146448
        %212 = vst.msk [vmem:[#allocation2 + $0x2] sm:$0xff] %vm211, %v188
        %213 = vst.msk [vmem:[#allocation2 + $0xa] sm:$0xff] %vm211, %v190
        %214 = vst.msk [vmem:[#allocation2 + $0x1a] sm:$0xff] %vm211, %v192
        %215 = vst.msk [vmem:[#allocation2 + $0x22] sm:$0xff] %vm211, %v194
        %216 = vst.msk [vmem:[#allocation2 + $0x32] sm:$0xff] %vm211, %v196
        %217 = vst.msk [vmem:[#allocation2 + $0x3a] sm:$0xff] %vm211, %v198
        %218 = vst.msk [vmem:[#allocation2 + $0x4a] sm:$0xff] %vm211, %v200
        %219 = vst.msk [vmem:[#allocation2 + $0x52] sm:$0xff] %vm211, %v202
        %v220 = vld [vmem:[#allocation2] sm:$0xff]
        %v221 = vld [vmem:[#allocation2 + $0x8] sm:$0xff]
        %v222 = vld [vmem:[#allocation2 + $0x10] sm:$0xf]
        %v223 = vld [vmem:[#allocation2 + $0x18] sm:$0xff]
        %v224 = vld [vmem:[#allocation2 + $0x20] sm:$0xff]
        %v225 = vld [vmem:[#allocation2 + $0x28] sm:$0xf]
        %v226 = vld [vmem:[#allocation2 + $0x30] sm:$0xff]
        %v227 = vld [vmem:[#allocation2 + $0x38] sm:$0xff]
        %v228 = vld [vmem:[#allocation2 + $0x40] sm:$0xf]
        %v229 = vld [vmem:[#allocation2 + $0x48] sm:$0xff]
        %v230 = vld [vmem:[#allocation2 + $0x50] sm:$0xff]
        %v231 = vld [vmem:[#allocation2 + $0x58] sm:$0xf]
        %vm244 = vcmask 1046528
        %v245 = vrot.slane %v220, 1
        %v246 = vrot.slane %v221, 1
        %v247 = vsel %vm244, %v245, %v246
        %v248 = vrot.slane %v222, 1
        %v249 = vsel %vm244, %v246, %v248
        %v250 = vrot.slane %v223, 1
        %v251 = vrot.slane %v224, 1
        %v252 = vsel %vm244, %v250, %v251
        %v253 = vrot.slane %v225, 1
        %v254 = vsel %vm244, %v251, %v253
        %v255 = vrot.slane %v226, 1
        %v256 = vrot.slane %v227, 1
        %v257 = vsel %vm244, %v255, %v256
        %v258 = vrot.slane %v228, 1
        %v259 = vsel %vm244, %v256, %v258
        %v260 = vrot.slane %v229, 1
        %v261 = vrot.slane %v230, 1
        %v262 = vsel %vm244, %v260, %v261
        %v263 = vrot.slane %v231, 1
        %v264 = vsel %vm244, %v261, %v263
        %v277 = vadd.f32 %v220, %v247
        %v278 = vadd.f32 %v221, %v249
        %v279 = vadd.f32 %v222, %v248
        %v280 = vadd.f32 %v223, %v252
        %v281 = vadd.f32 %v224, %v254
        %v282 = vadd.f32 %v225, %v253
        %v283 = vadd.f32 %v226, %v257
        %v284 = vadd.f32 %v227, %v259
        %v285 = vadd.f32 %v228, %v258
        %v286 = vadd.f32 %v229, %v262
        %v287 = vadd.f32 %v230, %v264
        %v288 = vadd.f32 %v231, %v263
        %vm289 = vcmask 1045504
        %v290 = vrot.slane %v220, 2
        %v291 = vrot.slane %v221, 2
        %v292 = vsel %vm289, %v290, %v291
        %v293 = vrot.slane %v222, 2
        %v294 = vsel %vm289, %v291, %v293
        %v295 = vrot.slane %v223, 2
        %v296 = vrot.slane %v224, 2
        %v297 = vsel %vm289, %v295, %v296
        %v298 = vrot.slane %v225, 2
        %v299 = vsel %vm289, %v296, %v298
        %v300 = vrot.slane %v226, 2
        %v301 = vrot.slane %v227, 2
        %v302 = vsel %vm289, %v300, %v301
        %v303 = vrot.slane %v228, 2
        %v304 = vsel %vm289, %v301, %v303
        %v305 = vrot.slane %v229, 2
        %v306 = vrot.slane %v230, 2
        %v307 = vsel %vm289, %v305, %v306
        %v308 = vrot.slane %v231, 2
        %v309 = vsel %vm289, %v306, %v308
        %v322 = vadd.f32 %v277, %v292
        %v323 = vadd.f32 %v278, %v294
        %v324 = vadd.f32 %v279, %v293
        %v325 = vadd.f32 %v280, %v297
        %v326 = vadd.f32 %v281, %v299
        %v327 = vadd.f32 %v282, %v298
        %v328 = vadd.f32 %v283, %v302
        %v329 = vadd.f32 %v284, %v304
        %v330 = vadd.f32 %v285, %v303
        %v331 = vadd.f32 %v286, %v307
        %v332 = vadd.f32 %v287, %v309
        %v333 = vadd.f32 %v288, %v308
        %vm334 = vcmask 1044480
        %v335 = vrot.slane %v220, 3
        %v336 = vrot.slane %v221, 3
        %v337 = vsel %vm334, %v335, %v336
        %v338 = vrot.slane %v222, 3
        %v339 = vsel %vm334, %v336, %v338
        %v340 = vrot.slane %v223, 3
        %v341 = vrot.slane %v224, 3
        %v342 = vsel %vm334, %v340, %v341
        %v343 = vrot.slane %v225, 3
        %v344 = vsel %vm334, %v341, %v343
        %v345 = vrot.slane %v226, 3
        %v346 = vrot.slane %v227, 3
        %v347 = vsel %vm334, %v345, %v346
        %v348 = vrot.slane %v228, 3
        %v349 = vsel %vm334, %v346, %v348
        %v350 = vrot.slane %v229, 3
        %v351 = vrot.slane %v230, 3
        %v352 = vsel %vm334, %v350, %v351
        %v353 = vrot.slane %v231, 3
        %v354 = vsel %vm334, %v351, %v353
        %v367 = vadd.f32 %v322, %v337
        %v368 = vadd.f32 %v323, %v339
        %v369 = vadd.f32 %v324, %v338
        %v370 = vadd.f32 %v325, %v342
        %v371 = vadd.f32 %v326, %v344
        %v372 = vadd.f32 %v327, %v343
        %v373 = vadd.f32 %v328, %v347
        %v374 = vadd.f32 %v329, %v349
        %v375 = vadd.f32 %v330, %v348
        %v376 = vadd.f32 %v331, %v352
        %v377 = vadd.f32 %v332, %v354
        %v378 = vadd.f32 %v333, %v353
        %391 = vrot.lane.b32.xlu0 %v367, 127
        %v392 = vpop.permute.xlu0 %391
        %393 = vrot.lane.b32.xlu0 %v368, 127
        %v394 = vpop.permute.xlu0 %393
        %395 = vrot.lane.b32.xlu0 %v369, 127
        %v396 = vpop.permute.xlu0 %395
        %397 = vrot.lane.b32.xlu0 %v370, 127
        %v398 = vpop.permute.xlu0 %397
        %399 = vrot.lane.b32.xlu0 %v371, 127
        %v400 = vpop.permute.xlu0 %399
        %401 = vrot.lane.b32.xlu0 %v372, 127
        %v402 = vpop.permute.xlu0 %401
        %403 = vrot.lane.b32.xlu0 %v373, 127
        %v404 = vpop.permute.xlu0 %403
        %405 = vrot.lane.b32.xlu0 %v374, 127
        %v406 = vpop.permute.xlu0 %405
        %407 = vrot.lane.b32.xlu0 %v375, 127
        %v408 = vpop.permute.xlu0 %407
        %409 = vrot.lane.b32.xlu0 %v376, 127
        %v410 = vpop.permute.xlu0 %409
        %411 = vrot.lane.b32.xlu0 %v377, 127
        %v412 = vpop.permute.xlu0 %411
        %413 = vrot.lane.b32.xlu0 %v378, 127
        %v414 = vpop.permute.xlu0 %413
        %v427 = vadd.f32 %v367, %v392
        %v428 = vadd.f32 %v368, %v394
        %v429 = vadd.f32 %v369, %v396
        %v430 = vadd.f32 %v370, %v398
        %v431 = vadd.f32 %v371, %v400
        %v432 = vadd.f32 %v372, %v402
        %v433 = vadd.f32 %v373, %v404
        %v434 = vadd.f32 %v374, %v406
        %v435 = vadd.f32 %v375, %v408
        %v436 = vadd.f32 %v376, %v410
        %v437 = vadd.f32 %v377, %v412
        %v438 = vadd.f32 %v378, %v414
        %439 = vrot.lane.b32.xlu0 %v367, 126
        %v440 = vpop.permute.xlu0 %439
        %441 = vrot.lane.b32.xlu0 %v368, 126
        %v442 = vpop.permute.xlu0 %441
        %443 = vrot.lane.b32.xlu0 %v369, 126
        %v444 = vpop.permute.xlu0 %443
        %445 = vrot.lane.b32.xlu0 %v370, 126
        %v446 = vpop.permute.xlu0 %445
        %447 = vrot.lane.b32.xlu0 %v371, 126
        %v448 = vpop.permute.xlu0 %447
        %449 = vrot.lane.b32.xlu0 %v372, 126
        %v450 = vpop.permute.xlu0 %449
        %451 = vrot.lane.b32.xlu0 %v373, 126
        %v452 = vpop.permute.xlu0 %451
        %453 = vrot.lane.b32.xlu0 %v374, 126
        %v454 = vpop.permute.xlu0 %453
        %455 = vrot.lane.b32.xlu0 %v375, 126
        %v456 = vpop.permute.xlu0 %455
        %457 = vrot.lane.b32.xlu0 %v376, 126
        %v458 = vpop.permute.xlu0 %457
        %459 = vrot.lane.b32.xlu0 %v377, 126
        %v460 = vpop.permute.xlu0 %459
        %461 = vrot.lane.b32.xlu0 %v378, 126
        %v462 = vpop.permute.xlu0 %461
        %v475 = vadd.f32 %v427, %v440
        %v476 = vadd.f32 %v428, %v442
        %v477 = vadd.f32 %v429, %v444
        %v478 = vadd.f32 %v430, %v446
        %v479 = vadd.f32 %v431, %v448
        %v480 = vadd.f32 %v432, %v450
        %v481 = vadd.f32 %v433, %v452
        %v482 = vadd.f32 %v434, %v454
        %v483 = vadd.f32 %v435, %v456
        %v484 = vadd.f32 %v436, %v458
        %v485 = vadd.f32 %v437, %v460
        %v486 = vadd.f32 %v438, %v462
        %487 = vrot.lane.b32.xlu0 %v367, 125
        %v488 = vpop.permute.xlu0 %487
        %489 = vrot.lane.b32.xlu0 %v368, 125
        %v490 = vpop.permute.xlu0 %489
        %491 = vrot.lane.b32.xlu0 %v369, 125
        %v492 = vpop.permute.xlu0 %491
        %493 = vrot.lane.b32.xlu0 %v370, 125
        %v494 = vpop.permute.xlu0 %493
        %495 = vrot.lane.b32.xlu0 %v371, 125
        %v496 = vpop.permute.xlu0 %495
        %497 = vrot.lane.b32.xlu0 %v372, 125
        %v498 = vpop.permute.xlu0 %497
        %499 = vrot.lane.b32.xlu0 %v373, 125
        %v500 = vpop.permute.xlu0 %499
        %501 = vrot.lane.b32.xlu0 %v374, 125
        %v502 = vpop.permute.xlu0 %501
        %503 = vrot.lane.b32.xlu0 %v375, 125
        %v504 = vpop.permute.xlu0 %503
        %505 = vrot.lane.b32.xlu0 %v376, 125
        %v506 = vpop.permute.xlu0 %505
        %507 = vrot.lane.b32.xlu0 %v377, 125
        %v508 = vpop.permute.xlu0 %507
        %509 = vrot.lane.b32.xlu0 %v378, 125
        %v510 = vpop.permute.xlu0 %509
        %v523 = vadd.f32 %v475, %v488
        %v524 = vadd.f32 %v476, %v490
        %v525 = vadd.f32 %v477, %v492
        %v526 = vadd.f32 %v478, %v494
        %v527 = vadd.f32 %v479, %v496
        %v528 = vadd.f32 %v480, %v498
        %v529 = vadd.f32 %v481, %v500
        %v530 = vadd.f32 %v482, %v502
        %v531 = vadd.f32 %v483, %v504
        %v532 = vadd.f32 %v484, %v506
        %v533 = vadd.f32 %v485, %v508
        %v534 = vadd.f32 %v486, %v510
        %vm535 = vcmask 138240
        %536 = vst.msk [vmem:[%s142] sm:$0xff] %vm535, %v523
        %537 = vst.msk [vmem:[%s142 + $0x8] sm:$0xff] %vm535, %v524
        %vm538 = vcmask 131072
        %539 = vst.msk [vmem:[%s142 + $0x10] sm:$0x1] %vm538, %v525
        %540 = vst.msk [vmem:[%s142 + $0x18] sm:$0xff] %vm535, %v526
        %541 = vst.msk [vmem:[%s142 + $0x20] sm:$0xff] %vm535, %v527
        %542 = vst.msk [vmem:[%s142 + $0x28] sm:$0x1] %vm538, %v528
        %543 = vst.msk [vmem:[%s142 + $0x30] sm:$0xff] %vm535, %v529
        %544 = vst.msk [vmem:[%s142 + $0x38] sm:$0xff] %vm535, %v530
        %545 = vst.msk [vmem:[%s142 + $0x40] sm:$0x1] %vm538, %v531
        %546 = vst.msk [vmem:[%s142 + $0x48] sm:$0xff] %vm535, %v532
        %547 = vst.msk [vmem:[%s142 + $0x50] sm:$0xff] %vm535, %v533
        %548 = vst.msk [vmem:[%s142 + $0x58] sm:$0x1] %vm538, %v534
        %s549 = smul.u32 4, %s15
        %p550 = scmp.lt.s32.totalorder %s549, 15
        %s551 = scalar_select %p550, %s549, 15
        %s552 = smul.addr %s551, 3
        %s553 = smul.addr %s552, 8
        %s554 = scalar_lea.vmem %s1, %s553
        // Predicated region
        $region29: #{tpu_custom_call.1} parent=23 // pred_check
          %p555 = pneg %p59
        $region30: #{tpu_custom_call.1} parent=23 // pred_check_branch
          %557 = sbr.rel (%p555) target = $region32
        $region31: #{tpu_custom_call.1} parent=23 // pred_region
          %s558 = smul.u32 4, %s15
        $region32: #{tpu_custom_call.1} parent=23 // pred_fallthru
          _
      $region24: #{tpu_custom_call.1} parent=5 // pred_fallthru
        _
      %p559 = scmp.le.s32.totalorder 2, %s10
      // Predicated region
      $region33: #{tpu_custom_call.1} parent=5 // pred_check
        %p560 = pneg %p559
      $region34: #{tpu_custom_call.1} parent=5 // pred_check_branch
        %562 = sbr.rel (%p560) target = $region36
      $region35: #{tpu_custom_call.1} parent=5 // pred_region
        %s563 = ssub.s32 %s10, 2
        // Predicated region
        $region37: #{tpu_custom_call.1} parent=35 // pred_check
          %p564 = pneg %p65
        $region38: #{tpu_custom_call.1} parent=35 // pred_check_branch
          %566 = sbr.rel (%p564) target = $region40
        $region39: #{tpu_custom_call.1} parent=35 // pred_region
          %s567 = smul.u32 4, %s16
          %p568 = scmp.lt.s32.totalorder %s567, 15
          %s569 = scalar_select %p568, %s567, 15
          %s570 = smul.addr %s569, 3
          %s571 = smul.addr %s570, 8
          %s572 = scalar_lea.vmem %s1, %s571
        $region40: #{tpu_custom_call.1} parent=35 // pred_fallthru
          _
      $region36: #{tpu_custom_call.1} parent=5 // pred_fallthru
        _
    $region6: #{tpu_custom_call.1} parent=1 // loop_footer
      %s14 = sadd.s32 1, %s10
    $region7: #{tpu_custom_call.1} parent=1 // loop_footer_branch
      %9 = sbr.rel target = $region3
    $region8: #{tpu_custom_call.1} parent=1 // loop_exit
      _
    %573 = vsyncpa [#allocation4], 1
    %s574 = scalar_lea.sflag [#allocation4], 1
    %575 = vsyncpa %s574, 1

</llo_original>
